<compile_context>
chip_gen: v5e
topology: v5e:2x2
jax: 0.10.0
libtpu: 0.0.40
codegen_flags: <defaults>
</compile_context>

<pallas_src>
import functools
import math

import jax
import jax.numpy as jnp
from jax.experimental import pallas as pl
from jax.experimental.pallas import tpu as pltpu


def _gat_kernel(x_ref, w_ref, b_ref, o_ref, *, num_batch, seq_len):
    e = x_ref.shape[-1]
    x = x_ref[...]                      # (N*L, E)  float32
    w = w_ref[...]                      # (E, 4E)   [wq^T | wk^T | wv^T | wo^T]
    b = b_ref[...]                      # (1, 4E)   [bq   | bk   | bv   | bo  ]

    # Fused QKV projection over all batch*seq rows: one MXU op instead of three.
    qkv = jnp.dot(x, w[:, : 3 * e], preferred_element_type=jnp.float32) + b[:, : 3 * e]
    q = qkv[:, 0 * e:1 * e].reshape(num_batch, seq_len, e)
    k = qkv[:, 1 * e:2 * e].reshape(num_batch, seq_len, e)
    v = qkv[:, 2 * e:3 * e].reshape(num_batch, seq_len, e)

    # Batched scores: contract the embed dims directly (no k.T / XLU transpose).
    scale = 1.0 / math.sqrt(e)
    scores = jnp.einsum("nle,nme->nlm", q, k,
                        preferred_element_type=jnp.float32) * scale        # (N, L, L)

    # Softmax over the key axis.
    m = jnp.max(scores, axis=-1, keepdims=True)
    p = jnp.exp(scores - m)
    attn = p * pl.reciprocal(jnp.sum(p, axis=-1, keepdims=True), approx=False)

    ctx = jnp.einsum("nlm,nme->nle", attn, v,
                     preferred_element_type=jnp.float32)                   # (N, L, E)

    # Output projection on all rows at once.
    out = (jnp.dot(ctx.reshape(num_batch * seq_len, e), w[:, 3 * e:],
                   preferred_element_type=jnp.float32) + b[:, 3 * e:])

    # ELU (alpha = 1.0); clamp the exp argument so the untaken branch never produces inf.
    o_ref[...] = jnp.where(out > 0, out, jnp.exp(jnp.minimum(out, 0.0)) - 1.0)


def gat_layer_forward(x_lne, params):
    """x_lne: (L, N, E) float32, PyTorch MultiheadAttention layout. Returns (L, N, E)."""
    L, N, E = x_lne.shape

    # (L, N, E) -> (N, L, E) -> (N*L, E): batch folded into matmul rows.
    x_rows = jnp.transpose(x_lne, (1, 0, 2)).reshape(N * L, E)

    # Pack all projection weights / biases into single slabs (2 param DMAs, not 8).
    w_packed = jnp.concatenate(
        [params["wq"].T, params["wk"].T, params["wv"].T, params["wo"].T], axis=1)   # (E, 4E)
    b_packed = jnp.concatenate(
        [params["bq"], params["bk"], params["bv"], params["bo"]]).reshape(1, 4 * E)  # (1, 4E)

    kernel = functools.partial(_gat_kernel, num_batch=N, seq_len=L)

    out_rows = pl.pallas_call(
        kernel,
        out_shape=jax.ShapeDtypeStruct((N * L, E), jnp.float32),
        grid=(1,),
        in_specs=[
            pl.BlockSpec((N * L, E), lambda i: (0, 0)),       # x rows
            pl.BlockSpec((E, 4 * E), lambda i: (0, 0)),       # packed weights
            pl.BlockSpec((1, 4 * E), lambda i: (0, 0)),       # packed biases
        ],
        out_specs=pl.BlockSpec((N * L, E), lambda i: (0, 0)),
        compiler_params=pltpu.CompilerParams(
            dimension_semantics=("arbitrary",)),
    )(x_rows, w_packed, b_packed)

    # TODO(synk): output last dim E=32 (<128 lanes) still uses masked stores; at ~2 KiB the
    # in-kernel relayout needed for a lane-dense (N, L*E) slab would cost more than it saves.
    return out_rows.reshape(N, L, E).transpose(1, 0, 2)   # back to (L, N, E)


def reference_forward(x_lne, params):
    """Pure-JAX reference of MultiheadAttention(num_heads=1, eval) + ELU."""
    E = x_lne.shape[-1]
    q = x_lne @ params["wq"].T + params["bq"]
    k = x_lne @ params["wk"].T + params["bk"]
    v = x_lne @ params["wv"].T + params["bv"]
    # (L, N, E) -> (N, L, E)
    q, k, v = (jnp.transpose(t, (1, 0, 2)) for t in (q, k, v))
    scores = jnp.einsum("nle,nme->nlm", q, k) / math.sqrt(E)
    attn = jax.nn.softmax(scores, axis=-1)
    ctx = jnp.einsum("nlm,nme->nle", attn, v)
    out = ctx @ params["wo"].T + params["bo"]
    out = jnp.transpose(out, (1, 0, 2))
    return jnp.where(out > 0, out, jnp.exp(out) - 1.0)


def init_params(key, embed_dim):
    # Deterministic synthetic init; shapes match nn.MultiheadAttention(embed_dim, 1).
    ks = jax.random.split(key, 6)
    bound = 1.0 / math.sqrt(embed_dim)
    in_proj_w = jax.random.uniform(ks[0], (3 * embed_dim, embed_dim),
                                   jnp.float32, -bound, bound)
    in_proj_b = jax.random.uniform(ks[1], (3 * embed_dim,), jnp.float32, -bound, bound)
    wo = jax.random.uniform(ks[2], (embed_dim, embed_dim), jnp.float32, -bound, bound)
    bo = jax.random.uniform(ks[3], (embed_dim,), jnp.float32, -bound, bound)
    E = embed_dim
    return {
        "wq": in_proj_w[0:E], "wk": in_proj_w[E:2 * E], "wv": in_proj_w[2 * E:3 * E],
        "bq": in_proj_b[0:E], "bk": in_proj_b[E:2 * E], "bv": in_proj_b[2 * E:3 * E],
        "wo": wo, "bo": bo,
    }
    # TODO(synk): self.fc (nn.Linear(input_dim, output_dim)) is defined but unused in forward; not materialized.


if __name__ == "__main__":
    L, N, E = 8, 2, 32          # seq=8, batch=2, output_dim(embed)=32
    key = jax.random.PRNGKey(0)
    kx, kp = jax.random.split(key)
    x = jax.random.normal(kx, (L, N, E), jnp.float32)   # (seq, batch, embed) like PyTorch
    adj = jnp.zeros((N, L, L), jnp.float32)             # unused in forward, kept for signature parity

    params = init_params(kp, E)

    out = gat_layer_forward(x, params)
    out = jax.block_until_ready(out)

    ref = reference_forward(x, params)
    assert out.shape == (L, N, E)
    assert jnp.allclose(out, ref, atol=1e-5, rtol=1e-5), "mismatch vs pure-JAX reference"

    print("KERNEL_OK")
</pallas_src>

<mosaic_0001>
module attributes {stable_mosaic.version = 11 : i64} {
  func.func @_gat_kernel(%arg0: i32, %arg1: memref<16x32xf32, #tpu.memory_space<vmem>>, %arg2: memref<32x128xf32, #tpu.memory_space<vmem>>, %arg3: memref<1x128xf32, #tpu.memory_space<vmem>>, %arg4: memref<16x32xf32, #tpu.memory_space<vmem>>) attributes {dimension_semantics = [#tpu.dimension_semantics<arbitrary>], iteration_bounds = array<i64: 1>, scalar_prefetch = 0 : i64, scratch_operands = 0 : i64, tpu.core_type = #tpu.core_type<tc>, window_params = [{pipeline_mode = #tpu.pipeline_mode<synchronous>, transform_indices = @transform_0, window_bounds = array<i64: 16, 32>}, {pipeline_mode = #tpu.pipeline_mode<synchronous>, transform_indices = @transform_1, window_bounds = array<i64: 32, 128>}, {pipeline_mode = #tpu.pipeline_mode<synchronous>, transform_indices = @transform_2, window_bounds = array<i64: 1, 128>}, {pipeline_mode = #tpu.pipeline_mode<synchronous>, transform_indices = @transform_3, window_bounds = array<i64: 16, 32>}]} {
    %c0 = arith.constant 0 : index
    %c0_0 = arith.constant 0 : index
    %0 = vector.load %arg1[%c0, %c0_0] : memref<16x32xf32, #tpu.memory_space<vmem>>, vector<16x32xf32>
    %c0_1 = arith.constant 0 : index
    %c0_2 = arith.constant 0 : index
    %1 = vector.load %arg2[%c0_1, %c0_2] : memref<32x128xf32, #tpu.memory_space<vmem>>, vector<32x128xf32>
    %c0_3 = arith.constant 0 : index
    %c0_4 = arith.constant 0 : index
    %2 = vector.load %arg3[%c0_3, %c0_4] : memref<1x128xf32, #tpu.memory_space<vmem>>, vector<1x128xf32>
    %3 = vector.extract_strided_slice %1 {offsets = [0, 0], sizes = [32, 96], strides = [1, 1]} : vector<32x128xf32> to vector<32x96xf32>
    %cst = arith.constant dense<0.000000e+00> : vector<16x96xf32>
    %4 = tpu.matmul %0, %3, %cst {dimension_numbers = #tpu.dot_dimension_numbers<[1], [0], [0], [1], [0, 0, 1, 1], [], []>} : vector<16x32xf32>, vector<32x96xf32>, vector<16x96xf32> -> vector<16x96xf32>
    %5 = vector.extract_strided_slice %2 {offsets = [0, 0], sizes = [1, 96], strides = [1, 1]} : vector<1x128xf32> to vector<1x96xf32>
    %6 = vector.broadcast %5 : vector<1x96xf32> to vector<16x96xf32>
    %7 = arith.addf %4, %6 : vector<16x96xf32>
    %8 = vector.extract_strided_slice %7 {offsets = [0, 0], sizes = [16, 32], strides = [1, 1]} : vector<16x96xf32> to vector<16x32xf32>
    %9 = vector.shape_cast %8 : vector<16x32xf32> to vector<2x8x32xf32>
    %10 = vector.extract_strided_slice %7 {offsets = [0, 32], sizes = [16, 32], strides = [1, 1]} : vector<16x96xf32> to vector<16x32xf32>
    %11 = vector.shape_cast %10 : vector<16x32xf32> to vector<2x8x32xf32>
    %12 = vector.extract_strided_slice %7 {offsets = [0, 64], sizes = [16, 32], strides = [1, 1]} : vector<16x96xf32> to vector<16x32xf32>
    %13 = vector.shape_cast %12 : vector<16x32xf32> to vector<2x8x32xf32>
    "tpu.trace_start"() <{level = 10 : i32, message = "nle,nme->nlm"}> : () -> ()
    %cst_5 = arith.constant dense<0.000000e+00> : vector<2x8x8xf32>
    %14 = tpu.matmul %9, %11, %cst_5 {dimension_numbers = #tpu.dot_dimension_numbers<[2], [2], [1], [1], [0, 0, 0, 1, 1, 1], [0], [0]>} : vector<2x8x32xf32>, vector<2x8x32xf32>, vector<2x8x8xf32> -> vector<2x8x8xf32>
    "tpu.trace_stop"() : () -> ()
    %cst_6 = arith.constant 0.176776692 : f32
    %15 = vector.broadcast %cst_6 : f32 to vector<2x8x8xf32>
    %16 = arith.mulf %14, %15 : vector<2x8x8xf32>
    %cst_7 = arith.constant dense<0xFF800000> : vector<2x8xf32>
    %17 = vector.multi_reduction <maximumf>, %16, %cst_7 [2] : vector<2x8x8xf32> to vector<2x8xf32>
    %18 = vector.shape_cast %17 : vector<2x8xf32> to vector<2x8x1xf32>
    %19 = vector.broadcast %18 : vector<2x8x1xf32> to vector<2x8x8xf32>
    %20 = arith.subf %16, %19 : vector<2x8x8xf32>
    %21 = math.exp %20 : vector<2x8x8xf32>
    %cst_8 = arith.constant dense<0.000000e+00> : vector<2x8xf32>
    %22 = vector.multi_reduction <add>, %21, %cst_8 [2] : vector<2x8x8xf32> to vector<2x8xf32>
    %23 = vector.shape_cast %22 : vector<2x8xf32> to vector<2x8x1xf32>
    %24 = tpu.reciprocal %23 : vector<2x8x1xf32> -> vector<2x8x1xf32>
    %25 = vector.broadcast %24 : vector<2x8x1xf32> to vector<2x8x8xf32>
    %26 = arith.mulf %21, %25 : vector<2x8x8xf32>
    "tpu.trace_start"() <{level = 10 : i32, message = "nlm,nme->nle"}> : () -> ()
    %cst_9 = arith.constant dense<0.000000e+00> : vector<2x8x32xf32>
    %27 = tpu.matmul %26, %13, %cst_9 {dimension_numbers = #tpu.dot_dimension_numbers<[2], [1], [1], [2], [0, 0, 0, 1, 1, 2], [0], [0]>} : vector<2x8x8xf32>, vector<2x8x32xf32>, vector<2x8x32xf32> -> vector<2x8x32xf32>
    "tpu.trace_stop"() : () -> ()
    %28 = vector.shape_cast %27 : vector<2x8x32xf32> to vector<16x32xf32>
    %29 = vector.extract_strided_slice %1 {offsets = [0, 96], sizes = [32, 32], strides = [1, 1]} : vector<32x128xf32> to vector<32x32xf32>
    %cst_10 = arith.constant dense<0.000000e+00> : vector<16x32xf32>
    %30 = tpu.matmul %28, %29, %cst_10 {dimension_numbers = #tpu.dot_dimension_numbers<[1], [0], [0], [1], [0, 0, 1, 1], [], []>} : vector<16x32xf32>, vector<32x32xf32>, vector<16x32xf32> -> vector<16x32xf32>
    %31 = vector.extract_strided_slice %2 {offsets = [0, 96], sizes = [1, 32], strides = [1, 1]} : vector<1x128xf32> to vector<1x32xf32>
    %32 = vector.broadcast %31 : vector<1x32xf32> to vector<16x32xf32>
    %33 = arith.addf %30, %32 : vector<16x32xf32>
    %cst_11 = arith.constant 0.000000e+00 : f32
    %34 = vector.broadcast %cst_11 : f32 to vector<16x32xf32>
    %35 = arith.cmpf ogt, %33, %34 : vector<16x32xf32>
    %cst_12 = arith.constant 0.000000e+00 : f32
    %36 = vector.broadcast %cst_12 : f32 to vector<16x32xf32>
    %37 = arith.minimumf %33, %36 : vector<16x32xf32>
    %38 = math.exp %37 : vector<16x32xf32>
    %cst_13 = arith.constant 1.000000e+00 : f32
    %39 = vector.broadcast %cst_13 : f32 to vector<16x32xf32>
    %40 = arith.subf %38, %39 : vector<16x32xf32>
    %41 = arith.select %35, %33, %40 : vector<16x32xi1>, vector<16x32xf32>
    %c0_14 = arith.constant 0 : index
    %c0_15 = arith.constant 0 : index
    %42 = vector.load %arg4[%c0_14, %c0_15] : memref<16x32xf32, #tpu.memory_space<vmem>>, vector<16x32xf32>
    tpu.vector_store %arg4[%c0_14, %c0_15], %41 {strides = array<i32>} : memref<16x32xf32, #tpu.memory_space<vmem>>, vector<16x32xf32>,
    return
  }
  func.func @transform_0(%arg0: i32) -> (i32, i32) {
    %c0_i32 = arith.constant 0 : i32
    %c0_i32_0 = arith.constant 0 : i32
    %c0_i32_1 = arith.constant 0 : i32
    return %c0_i32, %c0_i32_0 : i32, i32
  }
  func.func @transform_1(%arg0: i32) -> (i32, i32) {
    %c0_i32 = arith.constant 0 : i32
    %c0_i32_0 = arith.constant 0 : i32
    %c0_i32_1 = arith.constant 0 : i32
    return %c0_i32, %c0_i32_0 : i32, i32
  }
  func.func @transform_2(%arg0: i32) -> (i32, i32) {
    %c0_i32 = arith.constant 0 : i32
    %c0_i32_0 = arith.constant 0 : i32
    %c0_i32_1 = arith.constant 0 : i32
    return %c0_i32, %c0_i32_0 : i32, i32
  }
  func.func @transform_3(%arg0: i32) -> (i32, i32) {
    %c0_i32 = arith.constant 0 : i32
    %c0_i32_0 = arith.constant 0 : i32
    %c0_i32_1 = arith.constant 0 : i32
    return %c0_i32, %c0_i32_0 : i32, i32
  }
}

</mosaic_0001>

<llo_original>
// kernel: tpu_custom_call.1
$region0: #{tpu_custom_call.1}
  #allocation0 [shape = 'u32[]', space=smem, size = 0x4, offset = 0x4, fixed_abs, tag = 'smem constant byte address 0x4 - core index']
  #allocation1 [shape = 'u32[72,128]{1,0:T(1,128)}', space=vmem, size = 0x9000, scoped, tag = 'internal scratch']
  %s0 = inlined_call_operand.hbm [shape: f32[16,32], index: 0, kind: input, shape index: {}]
  %s1 = inlined_call_operand.hbm [shape: f32[32,128], index: 1, kind: input, shape index: {}]
  %s2 = inlined_call_operand.vmem [shape: f32[1,128], index: 2, kind: input, shape index: {}]
  %s3 = inlined_call_operand.hbm [shape: f32[16,32], index: 3, kind: output, shape index: {}]
  %s4 = sld [smem:[#allocation0]]
  $region30: #{tpu_custom_call.1} parent=0
    _
  %s6 = ssub.s32 1, %s4
  %s7 = scalar_select 0, %s6, %s4
  $region1: #{tpu_custom_call.1} parent=0
    #allocation2 [shape = 'u8[8192]{0}', space=vmem, size = 0x2000, scoped, tag = 'input window, operand 0, single buffered']
    #allocation3 [shape = 's32[1]{0}', space=sflag, size = 0x4, scoped, tag = 'scoped memory for tpu_custom_call.1']
    #allocation4 [shape = 's32[1]{0}', space=sflag, size = 0x4, scoped, tag = 'scoped memory for tpu_custom_call.1']
    #allocation5 [shape = 'u8[16384]{0}', space=vmem, size = 0x4000, scoped, tag = 'input window, operand 1, single buffered']
    #allocation6 [shape = 's32[1]{0}', space=sflag, size = 0x4, scoped, tag = 'scoped memory for tpu_custom_call.1']
    #allocation7 [shape = 'u8[8192]{0}', space=vmem, size = 0x2000, scoped, tag = 'output window, operand 0, single buffered']
    %8 = vsyncpa [#allocation3], 0
    %9 = vsyncpa [#allocation6], 0
    %10 = vsyncpa [#allocation4], 0
    // Predicated region
    $region2: #{tpu_custom_call.1} parent=1 // pred_check
      _
    $region3: #{tpu_custom_call.1} parent=1 // pred_check_branch
      %12 = sbr.rel (0) target = $region5
    $region4: #{tpu_custom_call.1} parent=1 // pred_region
      %14 = vsyncadd [#allocation3], 0
      %s15 = sshll.u32 %s0, 4
      %s16 = int_to_ptr.hbm [resolvable:$true] %s15
      %s17 = sshll.u32 [#allocation2], 4
      %s18 = int_to_ptr.vmem [resolvable:$true] %s17
      %23 = dma.hbm_to_vmem [thread:$0]  %s16, 256, %s18, [#allocation3], 128, 128, 8
    $region5: #{tpu_custom_call.1} parent=1 // pred_fallthru
      _
    // Predicated region
    $region6: #{tpu_custom_call.1} parent=1 // pred_check
      _
    $region7: #{tpu_custom_call.1} parent=1 // pred_check_branch
      %25 = sbr.rel (0) target = $region9
    $region8: #{tpu_custom_call.1} parent=1 // pred_region
      %27 = vsyncadd [#allocation6], 0
      %s28 = sshll.u32 %s1, 4
      %s29 = int_to_ptr.hbm [resolvable:$true] %s28
      %s30 = sshll.u32 [#allocation5], 4
      %s31 = int_to_ptr.vmem [resolvable:$true] %s30
      %36 = dma.hbm_to_vmem [thread:$0]  %s29, 512, %s31, [#allocation6], 128, 128, 8
    $region9: #{tpu_custom_call.1} parent=1 // pred_fallthru
      _
    // Predicated region
    $region10: #{tpu_custom_call.1} parent=1 // pred_check
      _
    $region11: #{tpu_custom_call.1} parent=1 // pred_check_branch
      %38 = sbr.rel (0) target = $region13
    $region12: #{tpu_custom_call.1} parent=1 // pred_region
      _
    $region13: #{tpu_custom_call.1} parent=1 // pred_fallthru
      _
    // Predicated region
    $region14: #{tpu_custom_call.1} parent=1 // pred_check
      _
    $region15: #{tpu_custom_call.1} parent=1 // pred_check_branch
      %40 = sbr.rel (0) target = $region17
    $region16: #{tpu_custom_call.1} parent=1 // pred_region
      %42 = dma.done [#allocation3], 256
    $region17: #{tpu_custom_call.1} parent=1 // pred_fallthru
      _
    // Predicated region
    $region18: #{tpu_custom_call.1} parent=1 // pred_check
      _
    $region19: #{tpu_custom_call.1} parent=1 // pred_check_branch
      %44 = sbr.rel (0) target = $region21
    $region20: #{tpu_custom_call.1} parent=1 // pred_region
      %46 = dma.done [#allocation6], 512
    $region21: #{tpu_custom_call.1} parent=1 // pred_fallthru
      _
    %v47 = vld [vmem:[#allocation2] sm:$0xff]
    %v48 = vld [vmem:[#allocation2 + $0x8] sm:$0xff]
    %v49 = vld [vmem:[#allocation5] sm:$0xff]
    %v50 = vld [vmem:[#allocation5 + $0x8] sm:$0xff]
    %v51 = vld [vmem:[#allocation5 + $0x10] sm:$0xff]
    %v52 = vld [vmem:[#allocation5 + $0x18] sm:$0xff]
    %v53 = vld [vmem:[%s2] sm:$0x1]
    %v55 = vperm.slane %v53, 0
    %vm57 = vcmask 261120
    %v59 = vsel %vm57, %v47, 0
    %v62 = vsel %vm57, %v48, 0
    %64 = vmatpush.msra.mxu0 0.0
    %65 = vmatpush.msra.mxu0 0.0
    %66 = vmatpush.msra.mxu0 0.0
    %67 = vmatpush.msra.mxu0 0.0
    %68 = vmatpush.msra.mxu0 0.0
    %69 = vmatpush.msra.mxu0 0.0
    %70 = vmatpush.msra.mxu0 0.0
    %71 = vmatpush.msra.mxu0 0.0
    %72 = vmatpush.msra.mxu0 0.0
    %73 = vmatpush.msra.mxu0 0.0
    %74 = vmatpush.msra.mxu0 0.0
    %75 = vmatpush.msra.mxu0 0.0
    %76 = vmatpush.msra.mxu0 %v52
    %77 = vmatpush.msra.mxu0 %v51
    %78 = vmatpush.msra.mxu0 %v50
    %79 = vmatpush.msra.mxu0 %v49
    %80 = vmatmul.f32.gmra.mxu0 %v59
    %v81 = vpop.f32.mrf.mxu0
    %v82 = vadd.f32 %v55, %v81
    %83 = vmatmul.f32.gmra.mxu0 %v62
    %v84 = vpop.f32.mrf.mxu0
    %v85 = vadd.f32 %v55, %v84
    %86 = vdwg.mxu0
    %88 = vrot.lane.b32.xlu0 %v82, 96
    %v89 = vpop.permute.xlu0 %88
    %v90 = vsel %vm57, %v82, 0
    %v92 = vsel %vm57, %v89, 0
    %94 = vmatpush.xpose.msra.mxu0 0.0
    %95 = vmatpush.xpose.msra.mxu0 0.0
    %96 = vmatpush.xpose.msra.mxu0 0.0
    %97 = vmatpush.xpose.msra.mxu0 0.0
    %98 = vmatpush.xpose.msra.mxu0 0.0
    %99 = vmatpush.xpose.msra.mxu0 0.0
    %100 = vmatpush.xpose.msra.mxu0 0.0
    %101 = vmatpush.xpose.msra.mxu0 0.0
    %102 = vmatpush.xpose.msra.mxu0 0.0
    %103 = vmatpush.xpose.msra.mxu0 0.0
    %104 = vmatpush.xpose.msra.mxu0 0.0
    %105 = vmatpush.xpose.msra.mxu0 0.0
    %106 = vmatpush.xpose.msra.mxu0 0.0
    %107 = vmatpush.xpose.msra.mxu0 0.0
    %108 = vmatpush.xpose.msra.mxu0 0.0
    %109 = vmatpush.xpose.msra.mxu0 %v92
    %110 = vmatmul.f32.gmra.mxu0 %v90
    %v111 = vpop.f32.mrf.mxu0
    %v112 = vadd.f32 0.0, %v111
    %113 = vdwg.mxu0
    %115 = vrot.lane.b32.xlu0 %v85, 96
    %v116 = vpop.permute.xlu0 %115
    %v117 = vsel %vm57, %v85, 0
    %v119 = vsel %vm57, %v116, 0
    %121 = vmatpush.xpose.msra.mxu0 0.0
    %122 = vmatpush.xpose.msra.mxu0 0.0
    %123 = vmatpush.xpose.msra.mxu0 0.0
    %124 = vmatpush.xpose.msra.mxu0 0.0
    %125 = vmatpush.xpose.msra.mxu0 0.0
    %126 = vmatpush.xpose.msra.mxu0 0.0
    %127 = vmatpush.xpose.msra.mxu0 0.0
    %128 = vmatpush.xpose.msra.mxu0 0.0
    %129 = vmatpush.xpose.msra.mxu0 0.0
    %130 = vmatpush.xpose.msra.mxu0 0.0
    %131 = vmatpush.xpose.msra.mxu0 0.0
    %132 = vmatpush.xpose.msra.mxu0 0.0
    %133 = vmatpush.xpose.msra.mxu0 0.0
    %134 = vmatpush.xpose.msra.mxu0 0.0
    %135 = vmatpush.xpose.msra.mxu0 0.0
    %136 = vmatpush.xpose.msra.mxu0 %v119
    %137 = vmatmul.f32.gmra.mxu0 %v117
    %v138 = vpop.f32.mrf.mxu0
    %v139 = vadd.f32 0.0, %v138
    %140 = vdwg.mxu0
    %v141 = vmul.f32 %v112, 0.17677669
    %v142 = vmul.f32 %v139, 0.17677669
    %vm143 = vcmask 64512
    %v144 = vsel %vm143, %v141, -inf
    %145 = vmax.xlane.f32.xlu0 %v144
    %v146 = vpop.xlane.xlu0 %145
    %v147 = vsel %vm143, %v142, -inf
    %148 = vmax.xlane.f32.xlu0 %v147
    %v149 = vpop.xlane.xlu0 %148
    %v150 = vsub.f32 %v141, %v146
    %v151 = vsub.f32 %v142, %v149
    %v152 = vmul.f32 %v150, 1.442695
    %v153 = vpow.pop %v152
    %v154 = vmul.f32 %v151, 1.442695
    %v155 = vpow.pop %v154
    %v156 = vsel %vm143, %v153, 0.0
    %157 = vadd.xlane.f32.xlu0 %v156
    %v158 = vpop.xlane.xlu0 %157
    %v159 = vsel %vm143, %v155, 0.0
    %160 = vadd.xlane.f32.xlu0 %v159
    %v161 = vpop.xlane.xlu0 %160
    %v162 = vrcp.pop %v158
    %v163 = vmul.f32 %v158, %v162
    %v164 = vsub.f32 1.0, %v163
    %v165 = vmul.f32 %v162, %v164
    %v166 = vadd.f32 %v162, %v165
    %vm167 = vweird.f32 %v158
    %vm168 = vweird.f32 %v162
    %vm169 = vmor %vm167, %vm168
    %v170 = vsel %vm169, %v162, %v166
    %v171 = vand.u32 2147483647, %v158
    %vm172 = vcmp.eq.f32.partialorder %v171, 8.507059e+37
    %v173 = vand.u32 %v158, 2147483648
    %v174 = vor.u32 1.1754944e-38, %v173
    %v175 = vsel %vm172, %v174, %v170
    %v176 = vrcp.pop %v161
    %v177 = vmul.f32 %v161, %v176
    %v178 = vsub.f32 1.0, %v177
    %v179 = vmul.f32 %v176, %v178
    %v180 = vadd.f32 %v176, %v179
    %vm181 = vweird.f32 %v161
    %vm182 = vweird.f32 %v176
    %vm183 = vmor %vm181, %vm182
    %v184 = vsel %vm183, %v176, %v180
    %v185 = vand.u32 2147483647, %v161
    %vm186 = vcmp.eq.f32.partialorder %v185, 8.507059e+37
    %v187 = vand.u32 %v161, 2147483648
    %v188 = vor.u32 1.1754944e-38, %v187
    %v189 = vsel %vm186, %v188, %v184
    %v190 = vmul.f32 %v153, %v175
    %v191 = vmul.f32 %v155, %v189
    %192 = vrot.lane.b32.xlu0 %v82, 64
    %v193 = vpop.permute.xlu0 %192
    %v196 = vsel %vm143, %v190, 0
    %198 = vmatpush.msra.mxu0 0.0
    %199 = vmatpush.msra.mxu0 0.0
    %200 = vmatpush.msra.mxu0 0.0
    %201 = vmatpush.msra.mxu0 0.0
    %202 = vmatpush.msra.mxu0 0.0
    %203 = vmatpush.msra.mxu0 0.0
    %204 = vmatpush.msra.mxu0 0.0
    %205 = vmatpush.msra.mxu0 0.0
    %206 = vmatpush.msra.mxu0 0.0
    %207 = vmatpush.msra.mxu0 0.0
    %208 = vmatpush.msra.mxu0 0.0
    %209 = vmatpush.msra.mxu0 0.0
    %210 = vmatpush.msra.mxu0 0.0
    %211 = vmatpush.msra.mxu0 0.0
    %212 = vmatpush.msra.mxu0 0.0
    %213 = vmatpush.msra.mxu0 %v193
    %214 = vmatmul.f32.gmra.mxu0 %v196
    %v215 = vpop.f32.mrf.mxu0
    %v216 = vadd.f32 0.0, %v215
    %217 = vdwg.mxu0
    %218 = vrot.lane.b32.xlu0 %v85, 64
    %v219 = vpop.permute.xlu0 %218
    %v222 = vsel %vm143, %v191, 0
    %224 = vmatpush.msra.mxu0 0.0
    %225 = vmatpush.msra.mxu0 0.0
    %226 = vmatpush.msra.mxu0 0.0
    %227 = vmatpush.msra.mxu0 0.0
    %228 = vmatpush.msra.mxu0 0.0
    %229 = vmatpush.msra.mxu0 0.0
    %230 = vmatpush.msra.mxu0 0.0
    %231 = vmatpush.msra.mxu0 0.0
    %232 = vmatpush.msra.mxu0 0.0
    %233 = vmatpush.msra.mxu0 0.0
    %234 = vmatpush.msra.mxu0 0.0
    %235 = vmatpush.msra.mxu0 0.0
    %236 = vmatpush.msra.mxu0 0.0
    %237 = vmatpush.msra.mxu0 0.0
    %238 = vmatpush.msra.mxu0 0.0
    %239 = vmatpush.msra.mxu0 %v219
    %240 = vmatmul.f32.gmra.mxu0 %v222
    %v241 = vpop.f32.mrf.mxu0
    %v242 = vadd.f32 0.0, %v241
    %243 = vdwg.mxu0
    %248 = vrot.lane.b32.xlu0 %v49, 32
    %v249 = vpop.permute.xlu0 %248
    %250 = vrot.lane.b32.xlu0 %v50, 32
    %v251 = vpop.permute.xlu0 %250
    %252 = vrot.lane.b32.xlu0 %v51, 32
    %v253 = vpop.permute.xlu0 %252
    %254 = vrot.lane.b32.xlu0 %v52, 32
    %v255 = vpop.permute.xlu0 %254
    %260 = vrot.lane.b32.xlu0 %v55, 32
    %v261 = vpop.permute.xlu0 %260
    %v264 = vsel %vm57, %v216, 0
    %v267 = vsel %vm57, %v242, 0
    %269 = vmatpush.msra.mxu0 0.0
    %270 = vmatpush.msra.mxu0 0.0
    %271 = vmatpush.msra.mxu0 0.0
    %272 = vmatpush.msra.mxu0 0.0
    %273 = vmatpush.msra.mxu0 0.0
    %274 = vmatpush.msra.mxu0 0.0
    %275 = vmatpush.msra.mxu0 0.0
    %276 = vmatpush.msra.mxu0 0.0
    %277 = vmatpush.msra.mxu0 0.0
    %278 = vmatpush.msra.mxu0 0.0
    %279 = vmatpush.msra.mxu0 0.0
    %280 = vmatpush.msra.mxu0 0.0
    %281 = vmatpush.msra.mxu0 %v255
    %282 = vmatpush.msra.mxu0 %v253
    %283 = vmatpush.msra.mxu0 %v251
    %284 = vmatpush.msra.mxu0 %v249
    %285 = vmatmul.f32.gmra.mxu0 %v264
    %v286 = vpop.f32.mrf.mxu0
    %v287 = vadd.f32 %v261, %v286
    %288 = vmatmul.f32.gmra.mxu0 %v267
    %v289 = vpop.f32.mrf.mxu0
    %v290 = vadd.f32 %v261, %v289
    %291 = vdwg.mxu0
    %vm292 = vcmp.gt.f32.partialorder %v287, 0.0
    %vm293 = vcmp.gt.f32.partialorder %v290, 0.0
    %v294 = vmin.f32 %v287, 0.0
    %v295 = vmin.f32 %v290, 0.0
    %v296 = vmul.f32 %v294, 1.442695
    %v297 = vpow.pop %v296
    %v298 = vmul.f32 %v295, 1.442695
    %v299 = vpow.pop %v298
    %v300 = vsub.f32 %v297, 1.0
    %v301 = vsub.f32 %v299, 1.0
    %v302 = vsel %vm292, %v287, %v300
    %v303 = vsel %vm293, %v290, %v301
    %304 = vst.msk [vmem:[#allocation7] sm:$0xff] %vm57, %v302
    %305 = vst.msk [vmem:[#allocation7 + $0x8] sm:$0xff] %vm57, %v303
    // Predicated region
    $region22: #{tpu_custom_call.1} parent=1 // pred_check
      _
    $region23: #{tpu_custom_call.1} parent=1 // pred_check_branch
      %307 = sbr.rel (0) target = $region25
    $region24: #{tpu_custom_call.1} parent=1 // pred_region
      %309 = vsyncadd [#allocation4], 0
      %s310 = sshll.u32 [#allocation7], 4
      %s311 = int_to_ptr.vmem [resolvable:$true] %s310
      %s312 = sshll.u32 %s3, 4
      %s313 = int_to_ptr.hbm [resolvable:$true] %s312
      %318 = dma.vmem_to_hbm [thread:$0]  %s311, 256, %s313, [#allocation4], 128, 128, 8
    $region25: #{tpu_custom_call.1} parent=1 // pred_fallthru
      _
    // Predicated region
    $region26: #{tpu_custom_call.1} parent=1 // pred_check
      _
    $region27: #{tpu_custom_call.1} parent=1 // pred_check_branch
      %320 = sbr.rel (0) target = $region29
    $region28: #{tpu_custom_call.1} parent=1 // pred_region
      %322 = dma.done [#allocation4], 256
    $region29: #{tpu_custom_call.1} parent=1 // pred_fallthru
      _
    %323 = vsyncpa [#allocation3], 1
    %324 = vsyncpa [#allocation6], 1
    %325 = vsyncpa [#allocation4], 1

</llo_original>
